<compile_context>
chip_gen: v7x
topology: tpu7x:2x2x1
jax: 0.10.0
libtpu: 0.0.40
codegen_flags: <defaults>
</compile_context>

<pallas_src>
import functools

import jax
import jax.numpy as jnp
from jax import lax
from jax.experimental import pallas as pl
from jax.experimental.pallas import tpu as pltpu


# --------------------------------------------------------------------------------------
# Kernel 1: router linear, tiled over tokens and (optionally) the hidden reduction axis,
#           lane-dense (E, T) outputs.
# --------------------------------------------------------------------------------------
def _router_logits_kernel(x_ref, wt_ref, logits_t_ref, aff_t_ref, acc_ref, *, act_fn: str):
    k = pl.program_id(1)

    @pl.when(k == 0)
    def _():
        acc_ref[...] = jnp.zeros_like(acc_ref)

    # Natural MXU form: LHS (TT, HK) contracts on its minor dim, RHS (HK, E) on its
    # major dim -> no transpose of the large x tile is materialized.  f32 accumulate.
    acc_ref[...] += jnp.dot(x_ref[...], wt_ref[...], preferred_element_type=jnp.float32)

    @pl.when(k == pl.num_programs(1) - 1)
    def _():
        # Tiny (TT, E) -> (E, TT) transpose (XLU, hidden under the x DMA) so both HBM
        # outputs are lane-dense in T.
        logits_t = acc_ref[...].T
        logits_t_ref[...] = logits_t
        # Affinity math stays in f32 (v5e VPU/EUP have no bf16); cast only at the store.
        if act_fn == "sigmoid":
            aff = jax.nn.sigmoid(logits_t)
        else:  # softmax over experts (axis 0 in the transposed layout)
            aff = jax.nn.softmax(logits_t, axis=0)
        aff_t_ref[...] = aff.astype(aff_t_ref.dtype)


# --------------------------------------------------------------------------------------
# Kernel 2: Sinkhorn balancing + top-1 argmax in the lane-dense (E, T) layout.
# --------------------------------------------------------------------------------------
def _sinkhorn_argmax_kernel(logits_t_ref, idx_ref, *, num_iters: int, use_sinkhorn: bool):
    logits_t = logits_t_ref[...]                     # (E, T) float32, T is lane-dense
    E, T = logits_t.shape

    if use_sinkhorn and num_iters > 0:
        # Global max-subtract stabilization (lane reduce then sublane reduce).
        c = jnp.max(jnp.max(logits_t, axis=1, keepdims=True), axis=0, keepdims=True)
        cost = jnp.exp(logits_t - c)                 # (E, T)

        d0 = jnp.ones((1, T), jnp.float32)           # per-token scaling
        d1 = jnp.ones((E, 1), jnp.float32)           # per-expert scaling
        eps = 1e-8
        inv_t = 1.0 / T
        inv_e = 1.0 / E

        def one_iter(d0, d1):
            d0 = inv_t / (jnp.sum(d1 * cost, axis=0, keepdims=True) + eps)  # (1, T)
            d1 = inv_e / (jnp.sum(d0 * cost, axis=1, keepdims=True) + eps)  # (E, 1)
            return d0, d1

        # 2x-unrolled fixed-trip-count loop (gives the scheduler cross-iteration
        # visibility without relying on scan unroll support in the lowering).
        UNROLL = 2
        n_major = num_iters // UNROLL
        n_rem = num_iters % UNROLL

        def body(_, carry):
            d0, d1 = carry
            for _ in range(UNROLL):
                d0, d1 = one_iter(d0, d1)
            return d0, d1

        d0, d1 = lax.fori_loop(0, n_major, body, (d0, d1))
        for _ in range(n_rem):
            d0, d1 = one_iter(d0, d1)

        # d0 is a strictly positive per-token (per-column) scale: dropping it leaves the
        # per-column argmax unchanged and saves a full (E, T) broadcast-multiply pass.
        sinkroute = d1 * cost                        # (E, T)
    else:
        # eval path (or num_iters == 0): argmax directly over the logits
        sinkroute = logits_t

    # top-1 expert index (first-occurrence tie-break), lane-dense (1, T) output.
    row = lax.broadcasted_iota(jnp.int32, (E, T), 0)
    mx = jnp.max(sinkroute, axis=0, keepdims=True)
    idx = jnp.min(jnp.where(sinkroute == mx, row, jnp.int32(E)), axis=0, keepdims=True)
    idx_ref[...] = idx.astype(idx_ref.dtype)


# --------------------------------------------------------------------------------------
# VMEM-aware tile selection
# --------------------------------------------------------------------------------------
def _vmem_limit_bytes() -> int:
    """Per-kernel scoped-VMEM limit derived from the chip's VMEM capacity."""
    try:
        cap = int(pltpu.get_tpu_info().vmem_capacity_bytes)
    except Exception:
        cap = 64 * 1024 * 1024  # conservative (v7x per-TensorCore); valid on all gens
    # ~25% headroom for Mosaic internal scratch; cap so v6e/v5e land around 96 MiB.
    return min(int(cap * 0.75), 100 * 1024 * 1024)


def _choose_tiles(T: int, H: int, E: int, itemsize: int, budget_bytes: int):
    """Pick (TT, HK): token tile and hidden (reduction) tile for kernel 1.

    Footprint model (double-buffered pipeline):
      2 x (TT, HK) x tiles + 2 x (HK, E) W^T tiles + 2 x (E, TT) f32 logits^T out
      + 2 x (E, TT) aff^T out + (TT, E) f32 accumulator (lane-padded).
    """
    def footprint(tt, hk):
        return (2 * tt * hk * itemsize
                + 2 * hk * E * itemsize
                + 2 * E * tt * 4
                + 2 * E * tt * itemsize
                + tt * max(E, 128) * 4)

    # Reduction-tile candidates: full H first, else multiple-of-128 exact divisors of H
    # (exact division keeps the accumulation free of padded-K garbage).
    hk_candidates = [H] + [d for d in range(((H - 1) // 128) * 128, 0, -128) if H % d == 0]

    if T <= 256:
        # Tiny token counts: a single full-extent token block (always layout-legal).
        tt_candidates = [T]
    else:
        # Keep >= 2 token tiles (pipelining + megacore); prefer big tiles (roofline knee
        # ~512), shrinking HK before TT so TT stays at/above the knee even for huge H.
        tt_candidates = [t for t in (2048, 1024, 512, 256, 128) if t < T] or [128]

    for tt in tt_candidates:
        for hk in hk_candidates:
            if footprint(tt, hk) <= budget_bytes:
                return tt, hk
    return tt_candidates[-1], hk_candidates[-1]  # last resort (smallest considered)


# --------------------------------------------------------------------------------------
# Wrapper
# --------------------------------------------------------------------------------------
def router_sinkhorn_forward(hidden_states, weight, *,
                            sinkhorn_iterations: int = 30,
                            training: bool = True,
                            act_fn: str = "sigmoid"):
    """hidden_states: (B, S, H); weight: (E, H) (torch nn.Linear layout).

    Returns (router_logits (T,E) f32, expert_affinities (T,E), expert_index (T,1) i32).
    """
    B, S, H = hidden_states.shape
    E, H_w = weight.shape
    assert H == H_w
    T = B * S

    x = hidden_states.reshape(T, H)
    if weight.dtype != x.dtype:
        weight = weight.astype(x.dtype)
    # Small one-time transpose (E x H) so the big x tile is streamed untransposed.
    w_t = weight.T  # (H, E)

    vmem_limit = _vmem_limit_bytes()
    itemsize = jnp.dtype(x.dtype).itemsize
    TT, HK = _choose_tiles(T, H, E, itemsize, int(vmem_limit * 0.9))
    n_t = pl.cdiv(T, TT)   # edge token block padded/clipped by Pallas
    n_k = H // HK          # HK divides H exactly by construction

    # ---- Kernel 1: tiled router matmul, lane-dense (E, T) outputs ----
    logits_t, aff_t = pl.pallas_call(
        functools.partial(_router_logits_kernel, act_fn=act_fn),
        grid=(n_t, n_k),
        in_specs=[
            pl.BlockSpec((TT, HK), lambda i, k: (i, k)),   # x tile
            pl.BlockSpec((HK, E), lambda i, k: (k, 0)),    # W^T tile (small)
        ],
        out_specs=[
            pl.BlockSpec((E, TT), lambda i, k: (0, i)),    # logits^T, lane-dense in T
            pl.BlockSpec((E, TT), lambda i, k: (0, i)),    # affinities^T, lane-dense in T
        ],
        out_shape=(
            jax.ShapeDtypeStruct((E, T), jnp.float32),
            jax.ShapeDtypeStruct((E, T), hidden_states.dtype),
        ),
        scratch_shapes=[pltpu.VMEM((TT, E), jnp.float32)],  # f32 accumulator across K
        compiler_params=pltpu.CompilerParams(
            dimension_semantics=("parallel", "arbitrary"),
            vmem_limit_bytes=vmem_limit,
        ),
    )(x, w_t)

    # ---- Kernel 2: Sinkhorn + argmax over the full (E, T) logits ----
    idx_t = pl.pallas_call(
        functools.partial(
            _sinkhorn_argmax_kernel,
            num_iters=sinkhorn_iterations,
            use_sinkhorn=training,
        ),
        grid=(1,),
        in_specs=[pl.BlockSpec((E, T), lambda i: (0, 0))],
        out_specs=pl.BlockSpec((1, T), lambda i: (0, 0)),
        out_shape=jax.ShapeDtypeStruct((1, T), jnp.int32),
        compiler_params=pltpu.CompilerParams(
            dimension_semantics=("arbitrary",),
            vmem_limit_bytes=vmem_limit,
        ),
    )(logits_t)

    # Layout plumbing back to the module's output shapes.
    router_logits = logits_t.T            # (T, E) float32
    expert_affinities = aff_t.T           # (T, E) input dtype
    expert_index = idx_t.reshape(T, 1)    # (T, 1) int32
    return router_logits, expert_affinities, expert_index


if __name__ == "__main__":
    # Small shapes consistent with the module: B=2, S=8, H=32, E=8, top_k=1.
    B, S, H, E = 2, 8, 32, 8
    T = B * S

    key = jax.random.PRNGKey(0)
    k_x, k_w = jax.random.split(key)

    hidden_states = jax.random.normal(k_x, (B, S, H), dtype=jnp.float32)
    # Deterministic init matching torch.nn.Linear: U(-1/sqrt(H), 1/sqrt(H)), shape (E, H).
    bound = 1.0 / (H ** 0.5)
    weight = jax.random.uniform(k_w, (E, H), minval=-bound, maxval=bound, dtype=jnp.float32)

    router_logits, expert_affinities, expert_index = router_sinkhorn_forward(
        hidden_states, weight, sinkhorn_iterations=30, training=True, act_fn="sigmoid"
    )
    jax.block_until_ready((router_logits, expert_affinities, expert_index))

    # Lightweight sanity check against a pure-JAX reference (same math as the kernel).
    x = hidden_states.reshape(-1, H)
    ref_logits = x @ weight.T
    ref_aff = jax.nn.sigmoid(ref_logits)
    c = jnp.max(ref_logits)
    cost = jnp.exp(ref_logits - c)
    d0 = jnp.ones((T, 1), jnp.float32)
    d1 = jnp.ones((1, E), jnp.float32)
    for _ in range(30):
        d0 = (1.0 / T) / (jnp.sum(d1 * cost, axis=1, keepdims=True) + 1e-8)
        d1 = (1.0 / E) / (jnp.sum(d0 * cost, axis=0, keepdims=True) + 1e-8)
    ref_idx = jnp.argmax(d1 * cost * d0, axis=1, keepdims=True).astype(jnp.int32)

    assert jnp.allclose(router_logits, ref_logits, atol=1e-5, rtol=1e-5)
    assert jnp.allclose(expert_affinities, ref_aff, atol=1e-5, rtol=1e-5)
    assert jnp.array_equal(expert_index, ref_idx)

    print("KERNEL_OK")
</pallas_src>

<mosaic_0001>
module attributes {stable_mosaic.version = 11 : i64} {
  func.func @_router_logits_kernel(%arg0: i32, %arg1: i32, %arg2: memref<16x32xf32, #tpu.memory_space<vmem>>, %arg3: memref<32x8xf32, #tpu.memory_space<vmem>>, %arg4: memref<8x16xf32, #tpu.memory_space<vmem>>, %arg5: memref<8x16xf32, #tpu.memory_space<vmem>>, %arg6: memref<16x8xf32, #tpu.memory_space<vmem>>) attributes {dimension_semantics = [#tpu.dimension_semantics<parallel>, #tpu.dimension_semantics<arbitrary>], iteration_bounds = array<i64: 1, 1>, scalar_prefetch = 0 : i64, scratch_operands = 1 : i64, tpu.core_type = #tpu.core_type<tc>, window_params = [{transform_indices = @transform_0, window_bounds = array<i64: 16, 32>}, {transform_indices = @transform_1, window_bounds = array<i64: 32, 8>}, {transform_indices = @transform_2, window_bounds = array<i64: 8, 16>}, {transform_indices = @transform_3, window_bounds = array<i64: 8, 16>}]} {
    %c0_i32 = arith.constant 0 : i32
    %0 = arith.cmpi eq, %arg1, %c0_i32 : i32
    %1 = arith.extui %0 : i1 to i32
    %c0_i32_0 = arith.constant 0 : i32
    %2 = arith.cmpi ne, %1, %c0_i32_0 : i32
    scf.if %2 {
      %cst_10 = arith.constant 0.000000e+00 : f32
      %12 = vector.broadcast %cst_10 : f32 to vector<16x8xf32>
      %c0_11 = arith.constant 0 : index
      %c0_12 = arith.constant 0 : index
      %13 = vector.load %arg6[%c0_11, %c0_12] : memref<16x8xf32, #tpu.memory_space<vmem>>, vector<16x8xf32>
      tpu.vector_store %arg6[%c0_11, %c0_12], %12 {strides = array<i32>} : memref<16x8xf32, #tpu.memory_space<vmem>>, vector<16x8xf32>,
    } else {
    }
    %c0 = arith.constant 0 : index
    %c0_1 = arith.constant 0 : index
    %3 = vector.load %arg6[%c0, %c0_1] : memref<16x8xf32, #tpu.memory_space<vmem>>, vector<16x8xf32>
    %c0_2 = arith.constant 0 : index
    %c0_3 = arith.constant 0 : index
    %4 = vector.load %arg2[%c0_2, %c0_3] : memref<16x32xf32, #tpu.memory_space<vmem>>, vector<16x32xf32>
    %c0_4 = arith.constant 0 : index
    %c0_5 = arith.constant 0 : index
    %5 = vector.load %arg3[%c0_4, %c0_5] : memref<32x8xf32, #tpu.memory_space<vmem>>, vector<32x8xf32>
    %cst = arith.constant dense<0.000000e+00> : vector<16x8xf32>
    %6 = tpu.matmul %4, %5, %cst {dimension_numbers = #tpu.dot_dimension_numbers<[1], [0], [0], [1], [0, 0, 1, 1], [], []>} : vector<16x32xf32>, vector<32x8xf32>, vector<16x8xf32> -> vector<16x8xf32>
    %7 = arith.addf %3, %6 : vector<16x8xf32>
    %c0_6 = arith.constant 0 : index
    %c0_7 = arith.constant 0 : index
    %8 = vector.load %arg6[%c0_6, %c0_7] : memref<16x8xf32, #tpu.memory_space<vmem>>, vector<16x8xf32>
    tpu.vector_store %arg6[%c0_6, %c0_7], %7 {strides = array<i32>} : memref<16x8xf32, #tpu.memory_space<vmem>>, vector<16x8xf32>,
    %c0_i32_8 = arith.constant 0 : i32
    %9 = arith.cmpi eq, %arg1, %c0_i32_8 : i32
    %10 = arith.extui %9 : i1 to i32
    %c0_i32_9 = arith.constant 0 : i32
    %11 = arith.cmpi ne, %10, %c0_i32_9 : i32
    scf.if %11 {
      %c0_10 = arith.constant 0 : index
      %c0_11 = arith.constant 0 : index
      %12 = vector.load %arg6[%c0_10, %c0_11] : memref<16x8xf32, #tpu.memory_space<vmem>>, vector<16x8xf32>
      %13 = tpu.transpose %12, [1, 0] : vector<16x8xf32> -> vector<8x16xf32>
      %c0_12 = arith.constant 0 : index
      %c0_13 = arith.constant 0 : index
      %14 = vector.load %arg4[%c0_12, %c0_13] : memref<8x16xf32, #tpu.memory_space<vmem>>, vector<8x16xf32>
      tpu.vector_store %arg4[%c0_12, %c0_13], %13 {strides = array<i32>} : memref<8x16xf32, #tpu.memory_space<vmem>>, vector<8x16xf32>,
      %15 = arith.negf %13 : vector<8x16xf32>
      %16 = math.exp %15 : vector<8x16xf32>
      %cst_14 = arith.constant 1.000000e+00 : f32
      %17 = vector.broadcast %cst_14 : f32 to vector<8x16xf32>
      %18 = arith.addf %17, %16 : vector<8x16xf32>
      %19 = arith.divf %17, %18 : vector<8x16xf32>
      %c0_15 = arith.constant 0 : index
      %c0_16 = arith.constant 0 : index
      %20 = vector.load %arg5[%c0_15, %c0_16] : memref<8x16xf32, #tpu.memory_space<vmem>>, vector<8x16xf32>
      tpu.vector_store %arg5[%c0_15, %c0_16], %19 {strides = array<i32>} : memref<8x16xf32, #tpu.memory_space<vmem>>, vector<8x16xf32>,
    } else {
    }
    return
  }
  func.func @transform_0(%arg0: i32, %arg1: i32) -> (i32, i32) {
    %c0_i32 = arith.constant 0 : i32
    return %arg0, %arg1 : i32, i32
  }
  func.func @transform_1(%arg0: i32, %arg1: i32) -> (i32, i32) {
    %c0_i32 = arith.constant 0 : i32
    %c0_i32_0 = arith.constant 0 : i32
    return %arg1, %c0_i32 : i32, i32
  }
  func.func @transform_2(%arg0: i32, %arg1: i32) -> (i32, i32) {
    %c0_i32 = arith.constant 0 : i32
    %c0_i32_0 = arith.constant 0 : i32
    return %c0_i32, %arg0 : i32, i32
  }
  func.func @transform_3(%arg0: i32, %arg1: i32) -> (i32, i32) {
    %c0_i32 = arith.constant 0 : i32
    %c0_i32_0 = arith.constant 0 : i32
    return %c0_i32, %arg0 : i32, i32
  }
}

</mosaic_0001>

<llo_original>
// kernel: tpu_custom_call.1
$region0: #{tpu_custom_call.1}
  #allocation0 [shape = 'u32[]', space=smem, size = 0x4, offset = 0x4, fixed_abs, tag = 'smem constant byte address 0x4 - core index']
  #allocation1 [shape = 'u32[144,128]{1,0:T(1,128)}', space=vmem, size = 0x12000, scoped, tag = 'internal scratch']
  #allocation2 [shape = 'f32[16,8]{1,0:T(8,128)}', space=vmem, size = 0x2000, scoped, tag = 'scratch operand']
  %s0 = inlined_call_operand.vmem [shape: f32[16,32], index: 0, kind: input, shape index: {}]
  %s1 = inlined_call_operand.vmem [shape: f32[32,8], index: 1, kind: input, shape index: {}]
  %s2 = inlined_call_operand.hbm [shape: f32[8,16], index: 2, kind: output, shape index: {0}]
  %s3 = inlined_call_operand.hbm [shape: f32[8,16], index: 3, kind: output, shape index: {1}]
  %4 = xla_tuple %s2, %s3
  %s5 = sld [smem:[#allocation0]]
  $region34: #{tpu_custom_call.1} parent=0
    _
  %s7 = ssub.s32 1, %s5
  %s8 = scalar_select 0, %s7, %s5
  $region1: #{tpu_custom_call.1} parent=0
    #allocation3 [shape = 'u8[4096]{0}', space=vmem, size = 0x1000, scoped, tag = 'output window, operand 0, single buffered']
    #allocation4 [shape = 's32[1]{0}', space=sflag, size = 0x4, scoped, tag = 'scoped memory for tpu_custom_call.1']
    #allocation5 [shape = 'u8[4096]{0}', space=vmem, size = 0x1000, scoped, tag = 'output window, operand 1, single buffered']
    #allocation6 [shape = 's32[1]{0}', space=sflag, size = 0x4, scoped, tag = 'scoped memory for tpu_custom_call.1']
    %9 = vsyncpa [#allocation4], 0
    %10 = vsyncpa [#allocation6], 0
    // Predicated region
    $region2: #{tpu_custom_call.1} parent=1 // pred_check
      _
    $region3: #{tpu_custom_call.1} parent=1 // pred_check_branch
      %12 = sbr.rel (0) target = $region5
    $region4: #{tpu_custom_call.1} parent=1 // pred_region
      _
    $region5: #{tpu_custom_call.1} parent=1 // pred_fallthru
      _
    // Predicated region
    $region6: #{tpu_custom_call.1} parent=1 // pred_check
      _
    $region7: #{tpu_custom_call.1} parent=1 // pred_check_branch
      %14 = sbr.rel (0) target = $region9
    $region8: #{tpu_custom_call.1} parent=1 // pred_region
      _
    $region9: #{tpu_custom_call.1} parent=1 // pred_fallthru
      _
    %p15 = scmp.eq.s32.totalorder 0, 0
    // Predicated region
    $region10: #{tpu_custom_call.1} parent=1 // pred_check
      %p16 = pneg %p15
    $region11: #{tpu_custom_call.1} parent=1 // pred_check_branch
      %18 = sbr.rel (%p16) target = $region13
    $region12: #{tpu_custom_call.1} parent=1 // pred_region
      %vm19 = vcmask 64512
      %20 = vst.msk [vmem:[#allocation2] sm:$0xff] %vm19, 0.0
      %21 = vst.msk [vmem:[#allocation2 + $0x8] sm:$0xff] %vm19, 0.0
    $region13: #{tpu_custom_call.1} parent=1 // pred_fallthru
      _
    %v22 = vld [vmem:[#allocation2] sm:$0xff]
    %v23 = vld [vmem:[#allocation2 + $0x8] sm:$0xff]
    %v24 = vld [vmem:[%s0] sm:$0xff]
    %v25 = vld [vmem:[%s0 + $0x8] sm:$0xff]
    %v26 = vld [vmem:[%s1] sm:$0xff]
    %v27 = vld [vmem:[%s1 + $0x8] sm:$0xff]
    %v28 = vld [vmem:[%s1 + $0x10] sm:$0xff]
    %v29 = vld [vmem:[%s1 + $0x18] sm:$0xff]
    %vm30 = vcmask 261120
    %v32 = vsel %vm30, %v24, 0
    %v35 = vsel %vm30, %v25, 0
    %37 = vmatprep.subr.mxu0 0.0
    %38 = vmatpush1.msra.mxu0 %v26
    %39 = vmatprep.subr.mxu0 0.0
    %40 = vmatpush1.msra.mxu0 %v27
    %41 = vmatprep.subr.mxu0 0.0
    %42 = vmatpush1.msra.mxu0 %v28
    %43 = vmatprep.subr.mxu0 0.0
    %44 = vmatpush1.msra.mxu0 %v29
    %45 = vmatprep.subr.mxu0 0.0
    %46 = vmatpush1.msra.mxu0 0.0
    %47 = vmatprep.subr.mxu0 0.0
    %48 = vmatpush1.msra.mxu0 0.0
    %49 = vmatprep.subr.mxu0 0.0
    %50 = vmatpush1.msra.mxu0 0.0
    %51 = vmatprep.subr.mxu0 0.0
    %52 = vmatpush1.msra.mxu0 0.0
    %53 = vmatprep.subr.mxu0 0.0
    %54 = vmatpush1.msra.mxu0 0.0
    %55 = vmatprep.subr.mxu0 0.0
    %56 = vmatpush1.msra.mxu0 0.0
    %57 = vmatprep.subr.mxu0 0.0
    %58 = vmatpush1.msra.mxu0 0.0
    %59 = vmatprep.subr.mxu0 0.0
    %60 = vmatpush1.msra.mxu0 0.0
    %61 = vmatprep.subr.mxu0 0.0
    %62 = vmatpush1.msra.mxu0 0.0
    %63 = vmatprep.subr.mxu0 0.0
    %64 = vmatpush1.msra.mxu0 0.0
    %65 = vmatprep.subr.mxu0 0.0
    %66 = vmatpush1.msra.mxu0 0.0
    %67 = vmatprep.subr.mxu0 0.0
    %68 = vmatpush1.msra.mxu0 0.0
    %69 = vmatprep.subr.mxu0 0.0
    %70 = vmatpush1.msra.mxu0 0.0
    %71 = vmatprep.subr.mxu0 0.0
    %72 = vmatpush1.msra.mxu0 0.0
    %73 = vmatprep.subr.mxu0 0.0
    %74 = vmatpush1.msra.mxu0 0.0
    %75 = vmatprep.subr.mxu0 0.0
    %76 = vmatpush1.msra.mxu0 0.0
    %77 = vmatprep.subr.mxu0 0.0
    %78 = vmatpush1.msra.mxu0 0.0
    %79 = vmatprep.subr.mxu0 0.0
    %80 = vmatpush1.msra.mxu0 0.0
    %81 = vmatprep.subr.mxu0 0.0
    %82 = vmatpush1.msra.mxu0 0.0
    %83 = vmatprep.subr.mxu0 0.0
    %84 = vmatpush1.msra.mxu0 0.0
    %85 = vmatprep.subr.mxu0 0.0
    %86 = vmatpush1.msra.mxu0 0.0
    %87 = vmatprep.subr.mxu0 0.0
    %88 = vmatpush1.msra.mxu0 0.0
    %89 = vmatprep.subr.mxu0 0.0
    %90 = vmatpush1.msra.mxu0 0.0
    %91 = vmatprep.subr.mxu0 0.0
    %92 = vmatpush1.msra.mxu0 0.0
    %93 = vmatprep.subr.mxu0 0.0
    %94 = vmatpush1.msra.mxu0 0.0
    %95 = vmatprep.subr.mxu0 0.0
    %96 = vmatpush1.msra.mxu0 0.0
    %97 = vmatprep.subr.mxu0 0.0
    %98 = vmatpush1.msra.mxu0 0.0
    %99 = vmatprep.subr.mxu0 0.0
    %100 = vmatpush1.msra.mxu0 0.0
    %101 = vmatprep.mubr.f32.mxu0 0.0
    %102 = vmatmul.mubr.f32.gmra.mrb[0].mxu0 %v32
    %v103 = vpop.f32.mrb[0].mxu0
    %v104 = vadd.f32 0.0, %v103
    %v105 = vpop.f32.mrb[0].mxu0
    %106 = vmatprep.mubr.f32.mxu0 0.0
    %107 = vmatmul.mubr.f32.gmra.mrb[0].mxu0 %v35
    %v108 = vpop.f32.mrb[0].mxu0
    %v109 = vadd.f32 0.0, %v108
    %v110 = vpop.f32.mrb[0].mxu0
    %111 = vdwg.mxu0
    %v112 = vadd.f32 %v22, %v104
    %v113 = vadd.f32 %v23, %v109
    %vm114 = vcmask 64512
    %115 = vst.msk [vmem:[#allocation2] sm:$0xff] %vm114, %v112
    %116 = vst.msk [vmem:[#allocation2 + $0x8] sm:$0xff] %vm114, %v113
    // Predicated region
    $region14: #{tpu_custom_call.1} parent=1 // pred_check
      %p117 = pneg %p15
    $region15: #{tpu_custom_call.1} parent=1 // pred_check_branch
      %119 = sbr.rel (%p117) target = $region17
    $region16: #{tpu_custom_call.1} parent=1 // pred_region
      %v120 = vld [vmem:[#allocation2] sm:$0xff]
      %v121 = vld [vmem:[#allocation2 + $0x8] sm:$0xff]
      %122 = vxpose.xlu0.b32.start [1/16] %v120, 128
      %123 = vxpose.xlu0.b32.cont [2/16] %v121, 128
      %124 = vxpose.xlu0.b32.cont [3/16] 0.0, 128
      %125 = vxpose.xlu0.b32.cont [4/16] 0.0, 128
      %126 = vxpose.xlu0.b32.cont [5/16] 0.0, 128
      %127 = vxpose.xlu0.b32.cont [6/16] 0.0, 128
      %128 = vxpose.xlu0.b32.cont [7/16] 0.0, 128
      %129 = vxpose.xlu0.b32.cont [8/16] 0.0, 128
      %130 = vxpose.xlu0.b32.cont [9/16] 0.0, 128
      %131 = vxpose.xlu0.b32.cont [10/16] 0.0, 128
      %132 = vxpose.xlu0.b32.cont [11/16] 0.0, 128
      %133 = vxpose.xlu0.b32.cont [12/16] 0.0, 128
      %134 = vxpose.xlu0.b32.cont [13/16] 0.0, 128
      %135 = vxpose.xlu0.b32.cont [14/16] 0.0, 128
      %136 = vxpose.xlu0.b32.cont [15/16] 0.0, 128
      %137 = vxpose.xlu0.b32.end [16/16] 0.0, 128
      %v138 = vpop.trf.xlu0
      %v139 = vpop.trf.xlu0
      %v140 = vpop.trf.xlu0
      %v141 = vpop.trf.xlu0
      %v142 = vpop.trf.xlu0
      %v143 = vpop.trf.xlu0
      %v144 = vpop.trf.xlu0
      %v145 = vpop.trf.xlu0
      %v146 = vpop.trf.xlu0
      %v147 = vpop.trf.xlu0
      %v148 = vpop.trf.xlu0
      %v149 = vpop.trf.xlu0
      %v150 = vpop.trf.xlu0
      %v151 = vpop.trf.xlu0
      %v152 = vpop.trf.xlu0
      %v153 = vpop.trf.xlu0
      %vm154 = vcmask 130048
      %155 = vst.msk [vmem:[#allocation3] sm:$0xff] %vm154, %v138
      %v156 = vxor.u32 %v138, 2147483648
      %v157 = vmul.f32 %v156, 1.442695
      %v158 = vpow.pop %v157
      %v159 = vadd.f32 %v158, 1.0
      %v160 = vrcp.pop %v159
      %v161 = vmul.f32 1.0, %v160
      %162 = vst.msk [vmem:[#allocation5] sm:$0xff] %vm154, %v161
    $region17: #{tpu_custom_call.1} parent=1 // pred_fallthru
      _
    // Predicated region
    $region18: #{tpu_custom_call.1} parent=1 // pred_check
      _
    $region19: #{tpu_custom_call.1} parent=1 // pred_check_branch
      %164 = sbr.rel (0) target = $region21
    $region20: #{tpu_custom_call.1} parent=1 // pred_region
      %s166 = ssub.s32 128, 128
      %167 = vsyncadd [#allocation4], %s166
      %s169 = sshll.u32 [#allocation3], 4
      %s170 = int_to_ptr.vmem [resolvable:$true] %s169
      %172 = dma.vmem_to_hbm [thread:$0]  %s170, 128, %s2, [#allocation4]
    $region21: #{tpu_custom_call.1} parent=1 // pred_fallthru
      _
    // Predicated region
    $region22: #{tpu_custom_call.1} parent=1 // pred_check
      _
    $region23: #{tpu_custom_call.1} parent=1 // pred_check_branch
      %174 = sbr.rel (0) target = $region25
    $region24: #{tpu_custom_call.1} parent=1 // pred_region
      %s176 = ssub.s32 128, 128
      %177 = vsyncadd [#allocation6], %s176
      %s179 = sshll.u32 [#allocation5], 4
      %s180 = int_to_ptr.vmem [resolvable:$true] %s179
      %182 = dma.vmem_to_hbm [thread:$0]  %s180, 128, %s3, [#allocation6]
    $region25: #{tpu_custom_call.1} parent=1 // pred_fallthru
      _
    // Predicated region
    $region26: #{tpu_custom_call.1} parent=1 // pred_check
      _
    $region27: #{tpu_custom_call.1} parent=1 // pred_check_branch
      %184 = sbr.rel (0) target = $region29
    $region28: #{tpu_custom_call.1} parent=1 // pred_region
      %185 = dma.done [#allocation4], 128
    $region29: #{tpu_custom_call.1} parent=1 // pred_fallthru
      _
    // Predicated region
    $region30: #{tpu_custom_call.1} parent=1 // pred_check
      _
    $region31: #{tpu_custom_call.1} parent=1 // pred_check_branch
      %187 = sbr.rel (0) target = $region33
    $region32: #{tpu_custom_call.1} parent=1 // pred_region
      %188 = dma.done [#allocation6], 128
    $region33: #{tpu_custom_call.1} parent=1 // pred_fallthru
      _
    %189 = vsyncpa [#allocation4], 1
    %190 = vsyncpa [#allocation6], 1

</llo_original>
